<compile_context>
chip_gen: v5e
topology: v5e:2x2
jax: 0.10.0
libtpu: 0.0.40
codegen_flags: <defaults>
</compile_context>

<pallas_src>
import functools
import math

import jax
import jax.numpy as jnp
from jax.experimental import pallas as pl
from jax.experimental.pallas import tpu as pltpu

_LN2 = math.log(2.0)
_LANES = 128
_SUBLANES = 8
_MAX_BLOCK_ROWS = 1024   # 1024 x 128 x 4 B = 512 KiB per f32 block


def _round_up(x, m):
    return ((x + m - 1) // m) * m


def _nll_block(loc_ref, scale_ref, tgt_ref, eps):
    """Elementwise Laplace NLL on one lane-dense [block_rows, 128] tile (f32)."""
    loc = loc_ref[...].astype(jnp.float32)
    scale = jnp.maximum(scale_ref[...].astype(jnp.float32), jnp.float32(eps))
    tgt = tgt_ref[...].astype(jnp.float32)
    # log(2*scale) == log(scale) + ln2 ; keep the exact divide for accuracy.
    return (jnp.log(scale) + jnp.float32(_LN2)) + jnp.abs(tgt - loc) / scale


def _reduce_kernel(loc_ref, scale_ref, tgt_ref, out_ref, *, eps):
    # Grid: (num_cores [parallel], tiles_per_core [arbitrary]).
    # out_ref is the per-core resident (8, 128) accumulator block.
    @pl.when(pl.program_id(1) == 0)
    def _():
        out_ref[...] = jnp.zeros_like(out_ref)

    nll = _nll_block(loc_ref, scale_ref, tgt_ref, eps)
    # Fold (block_rows, 128) -> (8, 128): sublane-tile-aligned reshape, then a
    # leading-axis sum = plain vreg adds (no XLU, no masked stores).
    out_ref[...] += jnp.sum(nll.reshape(-1, _SUBLANES, _LANES), axis=0)


def _elementwise_kernel(loc_ref, scale_ref, tgt_ref, out_ref, *, eps):
    out_ref[...] = _nll_block(loc_ref, scale_ref, tgt_ref, eps).astype(out_ref.dtype)


def _pad_to_rows(flat, padded_rows, fill):
    pad = padded_rows * _LANES - flat.shape[0]
    if pad:
        flat = jnp.pad(flat, (0, pad), constant_values=fill)
    return flat.reshape(padded_rows, _LANES)


def laplace_nll_loss(y_hat, y_gt, pi=None, *, eps=1e-6, reduction="mean"):
    """Pallas implementation of LaplaceNLLLoss.forward (pi is unused, as in the reference)."""
    del pi  # unused, mirrors the reference forward
    d = y_gt.shape[-1]
    assert y_hat.shape[-1] == 2 * d, "y_hat last dim must be 2 * y_gt last dim"
    lead_shape = y_gt.shape[:-1]

    # Split loc/scale in XLA (cheap slice), flatten to lane-dense 1-D. Keep the
    # native dtype; the kernel upcasts in-vreg (halves HBM traffic for bf16).
    loc = y_hat[..., :d].reshape(-1)
    scale = y_hat[..., d:].reshape(-1)
    tgt = y_gt.reshape(-1)
    n = tgt.shape[0]
    assert loc.shape[0] == n, "y_hat and y_gt leading shapes must match"
    out_dtype = jnp.result_type(y_hat.dtype, y_gt.dtype)

    rows = pl.cdiv(n, _LANES)
    # Neutral padding: loc=0, tgt=0, scale=0.5 -> nll = log(1) + 0 = 0 exactly
    # (whenever eps <= 0.5, the normal case). For eps > 0.5 the analytic pad
    # contribution is subtracted below.
    pad_scale = max(float(eps), 0.5)
    pad_nll = math.log(2.0 * pad_scale)   # == 0.0 for eps <= 0.5

    if reduction in ("mean", "sum"):
        total_tiles = pl.cdiv(rows, _MAX_BLOCK_ROWS)
        num_cores = 2 if total_tiles >= 2 else 1
        tiles_per_core = pl.cdiv(total_tiles, num_cores)
        # Padding-minimizing block size: always 8-row aligned and <= 1024 rows.
        block_rows = _round_up(pl.cdiv(rows, num_cores * tiles_per_core), _SUBLANES)
        padded_rows = num_cores * tiles_per_core * block_rows

        loc2d = _pad_to_rows(loc, padded_rows, 0.0)
        scale2d = _pad_to_rows(scale, padded_rows, pad_scale)
        tgt2d = _pad_to_rows(tgt, padded_rows, 0.0)

        in_map = lambda c, i, t=tiles_per_core: (c * t + i, 0)
        partials = pl.pallas_call(
            functools.partial(_reduce_kernel, eps=float(eps)),
            out_shape=jax.ShapeDtypeStruct((num_cores * _SUBLANES, _LANES),
                                           jnp.float32),
            grid_spec=pltpu.PrefetchScalarGridSpec(
                num_scalar_prefetch=0,
                grid=(num_cores, tiles_per_core),
                in_specs=[pl.BlockSpec((block_rows, _LANES), in_map)
                          for _ in range(3)],
                out_specs=pl.BlockSpec((_SUBLANES, _LANES),
                                       lambda c, i: (c, 0)),
            ),
            compiler_params=pltpu.CompilerParams(
                dimension_semantics=("parallel", "arbitrary")),
        )(loc2d, scale2d, tgt2d)

        total = jnp.sum(partials)            # tiny finalize: <= 2048 f32 values
        if pad_nll != 0.0:                   # only for pathological eps > 0.5
            total = total - jnp.float32(padded_rows * _LANES - n) * jnp.float32(pad_nll)
        if reduction == "mean":
            total = total / jnp.float32(n)   # divide by TRUE element count
        return total.astype(out_dtype)

    elif reduction == "none":
        num_tiles = pl.cdiv(rows, _MAX_BLOCK_ROWS)
        block_rows = _round_up(pl.cdiv(rows, num_tiles), _SUBLANES)
        padded_rows = num_tiles * block_rows

        loc2d = _pad_to_rows(loc, padded_rows, 0.0)
        scale2d = _pad_to_rows(scale, padded_rows, pad_scale)
        tgt2d = _pad_to_rows(tgt, padded_rows, 0.0)

        out2d = pl.pallas_call(
            functools.partial(_elementwise_kernel, eps=float(eps)),
            out_shape=jax.ShapeDtypeStruct((padded_rows, _LANES), out_dtype),
            grid_spec=pltpu.PrefetchScalarGridSpec(
                num_scalar_prefetch=0,
                grid=(num_tiles,),
                in_specs=[pl.BlockSpec((block_rows, _LANES), lambda i: (i, 0))
                          for _ in range(3)],
                out_specs=pl.BlockSpec((block_rows, _LANES), lambda i: (i, 0)),
            ),
            compiler_params=pltpu.CompilerParams(
                dimension_semantics=("parallel",)),
        )(loc2d, scale2d, tgt2d)
        return out2d.reshape(-1)[:n].reshape(*lead_shape, d)

    else:
        raise ValueError(f"{reduction} is not a valid value for reduction")


def _reference(y_hat, y_gt, eps=1e-6, reduction="mean"):
    d = y_gt.shape[-1]
    loc = y_hat[..., :d].astype(jnp.float32)
    scale = jnp.maximum(y_hat[..., d:].astype(jnp.float32), eps)
    nll = jnp.log(2.0 * scale) + jnp.abs(y_gt.astype(jnp.float32) - loc) / scale
    if reduction == "mean":
        return nll.mean()
    if reduction == "sum":
        return nll.sum()
    return nll


if __name__ == "__main__":
    key = jax.random.PRNGKey(0)
    k1, k2, k3, k4, k5 = jax.random.split(key, 5)

    # HiVT-style small shapes: [num_nodes=8, horizon=16, 4] predictions
    # (loc 2 + scale 2), [8, 16, 2] targets, [8, 16] mixture logits (unused).
    y_hat = jax.random.normal(k1, (8, 16, 4), dtype=jnp.float32)
    y_gt = jax.random.normal(k2, (8, 16, 2), dtype=jnp.float32)
    pi = jax.random.normal(k3, (8, 16), dtype=jnp.float32)

    for red in ("mean", "sum"):
        out = jax.block_until_ready(
            laplace_nll_loss(y_hat, y_gt, pi, eps=1e-6, reduction=red))
        ref = _reference(y_hat, y_gt, eps=1e-6, reduction=red)
        assert jnp.allclose(out, ref, rtol=1e-5, atol=1e-5), (red, out, ref)

    out_none = jax.block_until_ready(
        laplace_nll_loss(y_hat, y_gt, pi, reduction="none"))
    ref_none = _reference(y_hat, y_gt, reduction="none")
    assert jnp.allclose(out_none, ref_none, rtol=1e-5, atol=1e-5)

    # Moderately larger shape exercising the multi-tile path, the two-core split
    # and the padding-minimizing tiling (2560 rows -> zero padding).
    y_hat_b = jax.random.normal(k4, (128, 64, 80), dtype=jnp.float32)
    y_gt_b = jax.random.normal(k5, (128, 64, 40), dtype=jnp.float32)
    out_b = jax.block_until_ready(
        laplace_nll_loss(y_hat_b, y_gt_b, None, reduction="mean"))
    ref_b = _reference(y_hat_b, y_gt_b, reduction="mean")
    assert jnp.allclose(out_b, ref_b, rtol=1e-4, atol=1e-4), (out_b, ref_b)

    # Native bf16 streaming path (in-vreg upcast); output is bf16, hence loose rtol.
    y_hat_h = y_hat_b.astype(jnp.bfloat16)
    y_gt_h = y_gt_b.astype(jnp.bfloat16)
    out_h = jax.block_until_ready(
        laplace_nll_loss(y_hat_h, y_gt_h, None, reduction="mean"))
    ref_h = _reference(y_hat_h, y_gt_h, reduction="mean")
    assert jnp.allclose(out_h.astype(jnp.float32), ref_h, rtol=1e-2), (out_h, ref_h)

    print("KERNEL_OK")
</pallas_src>

<mosaic_0001>
module attributes {stable_mosaic.version = 11 : i64} {
  func.func @_reduce_kernel(%arg0: i32, %arg1: i32, %arg2: memref<8x128xf32, #tpu.memory_space<vmem>>, %arg3: memref<8x128xf32, #tpu.memory_space<vmem>>, %arg4: memref<8x128xf32, #tpu.memory_space<vmem>>, %arg5: memref<8x128xf32, #tpu.memory_space<vmem>>) attributes {dimension_semantics = [#tpu.dimension_semantics<parallel>, #tpu.dimension_semantics<arbitrary>], iteration_bounds = array<i64: 1, 1>, scalar_prefetch = 0 : i64, scratch_operands = 0 : i64, tpu.core_type = #tpu.core_type<tc>, window_params = [{transform_indices = @transform_0, window_bounds = array<i64: 8, 128>}, {transform_indices = @transform_1, window_bounds = array<i64: 8, 128>}, {transform_indices = @transform_2, window_bounds = array<i64: 8, 128>}, {transform_indices = @transform_3, window_bounds = array<i64: 8, 128>}]} {
    %c0_i32 = arith.constant 0 : i32
    %0 = arith.cmpi eq, %arg1, %c0_i32 : i32
    %1 = arith.extui %0 : i1 to i32
    %c0_i32_0 = arith.constant 0 : i32
    %2 = arith.cmpi ne, %1, %c0_i32_0 : i32
    scf.if %2 {
      %cst_12 = arith.constant 0.000000e+00 : f32
      %20 = vector.broadcast %cst_12 : f32 to vector<8x128xf32>
      %c0_13 = arith.constant 0 : index
      %c0_14 = arith.constant 0 : index
      %21 = vector.load %arg5[%c0_13, %c0_14] : memref<8x128xf32, #tpu.memory_space<vmem>>, vector<8x128xf32>
      tpu.vector_store %arg5[%c0_13, %c0_14], %20 {strides = array<i32>} : memref<8x128xf32, #tpu.memory_space<vmem>>, vector<8x128xf32>,
    } else {
    }
    %c0 = arith.constant 0 : index
    %c0_1 = arith.constant 0 : index
    %3 = vector.load %arg2[%c0, %c0_1] : memref<8x128xf32, #tpu.memory_space<vmem>>, vector<8x128xf32>
    %c0_2 = arith.constant 0 : index
    %c0_3 = arith.constant 0 : index
    %4 = vector.load %arg3[%c0_2, %c0_3] : memref<8x128xf32, #tpu.memory_space<vmem>>, vector<8x128xf32>
    %cst = arith.constant 9.99999997E-7 : f32
    %5 = vector.broadcast %cst : f32 to vector<8x128xf32>
    %6 = arith.maximumf %4, %5 : vector<8x128xf32>
    %c0_4 = arith.constant 0 : index
    %c0_5 = arith.constant 0 : index
    %7 = vector.load %arg4[%c0_4, %c0_5] : memref<8x128xf32, #tpu.memory_space<vmem>>, vector<8x128xf32>
    %8 = math.log %6 : vector<8x128xf32>
    %cst_6 = arith.constant 0.693147182 : f32
    %9 = vector.broadcast %cst_6 : f32 to vector<8x128xf32>
    %10 = arith.addf %8, %9 : vector<8x128xf32>
    %11 = arith.subf %7, %3 : vector<8x128xf32>
    %12 = math.absf %11 : vector<8x128xf32>
    %13 = arith.divf %12, %6 : vector<8x128xf32>
    %14 = arith.addf %10, %13 : vector<8x128xf32>
    %c0_7 = arith.constant 0 : index
    %c0_8 = arith.constant 0 : index
    %15 = vector.load %arg5[%c0_7, %c0_8] : memref<8x128xf32, #tpu.memory_space<vmem>>, vector<8x128xf32>
    %16 = vector.shape_cast %14 : vector<8x128xf32> to vector<1x8x128xf32>
    %cst_9 = arith.constant dense<0.000000e+00> : vector<8x128xf32>
    %17 = vector.multi_reduction <add>, %16, %cst_9 [0] : vector<1x8x128xf32> to vector<8x128xf32>
    %18 = arith.addf %15, %17 : vector<8x128xf32>
    %c0_10 = arith.constant 0 : index
    %c0_11 = arith.constant 0 : index
    %19 = vector.load %arg5[%c0_10, %c0_11] : memref<8x128xf32, #tpu.memory_space<vmem>>, vector<8x128xf32>
    tpu.vector_store %arg5[%c0_10, %c0_11], %18 {strides = array<i32>} : memref<8x128xf32, #tpu.memory_space<vmem>>, vector<8x128xf32>,
    return
  }
  func.func @transform_0(%arg0: i32, %arg1: i32) -> (i32, i32) {
    %c1_i32 = arith.constant 1 : i32
    %0 = arith.muli %arg0, %c1_i32 : i32
    %1 = arith.addi %0, %arg1 : i32
    %c0_i32 = arith.constant 0 : i32
    %c0_i32_0 = arith.constant 0 : i32
    return %1, %c0_i32 : i32, i32
  }
  func.func @transform_1(%arg0: i32, %arg1: i32) -> (i32, i32) {
    %c1_i32 = arith.constant 1 : i32
    %0 = arith.muli %arg0, %c1_i32 : i32
    %1 = arith.addi %0, %arg1 : i32
    %c0_i32 = arith.constant 0 : i32
    %c0_i32_0 = arith.constant 0 : i32
    return %1, %c0_i32 : i32, i32
  }
  func.func @transform_2(%arg0: i32, %arg1: i32) -> (i32, i32) {
    %c1_i32 = arith.constant 1 : i32
    %0 = arith.muli %arg0, %c1_i32 : i32
    %1 = arith.addi %0, %arg1 : i32
    %c0_i32 = arith.constant 0 : i32
    %c0_i32_0 = arith.constant 0 : i32
    return %1, %c0_i32 : i32, i32
  }
  func.func @transform_3(%arg0: i32, %arg1: i32) -> (i32, i32) {
    %c0_i32 = arith.constant 0 : i32
    %c0_i32_0 = arith.constant 0 : i32
    return %arg0, %c0_i32 : i32, i32
  }
}

</mosaic_0001>

<llo_original>
// kernel: tpu_custom_call.1
$region0: #{tpu_custom_call.1}
  #allocation0 [shape = 'u32[]', space=smem, size = 0x4, offset = 0x4, fixed_abs, tag = 'smem constant byte address 0x4 - core index']
  #allocation1 [shape = 'u32[72,128]{1,0:T(1,128)}', space=vmem, size = 0x9000, scoped, tag = 'internal scratch']
  %s0 = inlined_call_operand.hbm [shape: f32[8,128], index: 0, kind: input, shape index: {}]
  %s1 = inlined_call_operand.hbm [shape: f32[8,128], index: 1, kind: input, shape index: {}]
  %s2 = inlined_call_operand.hbm [shape: f32[8,128], index: 2, kind: input, shape index: {}]
  %s3 = inlined_call_operand.hbm [shape: f32[8,128], index: 3, kind: output, shape index: {}]
  %s4 = sld [smem:[#allocation0]]
  $region38: #{tpu_custom_call.1} parent=0
    _
  %s6 = ssub.s32 1, %s4
  %s7 = scalar_select 0, %s6, %s4
  $region1: #{tpu_custom_call.1} parent=0
    #allocation2 [shape = 'u8[4096]{0}', space=vmem, size = 0x1000, scoped, tag = 'input window, operand 0, single buffered']
    #allocation3 [shape = 's32[1]{0}', space=sflag, size = 0x4, scoped, tag = 'scoped memory for tpu_custom_call.1']
    #allocation4 [shape = 's32[1]{0}', space=sflag, size = 0x4, scoped, tag = 'scoped memory for tpu_custom_call.1']
    #allocation5 [shape = 'u8[4096]{0}', space=vmem, size = 0x1000, scoped, tag = 'input window, operand 1, single buffered']
    #allocation6 [shape = 's32[1]{0}', space=sflag, size = 0x4, scoped, tag = 'scoped memory for tpu_custom_call.1']
    #allocation7 [shape = 'u8[4096]{0}', space=vmem, size = 0x1000, scoped, tag = 'input window, operand 2, single buffered']
    #allocation8 [shape = 'u8[4096]{0}', space=vmem, size = 0x1000, scoped, tag = 'output window, operand 0, single buffered']
    %8 = vsyncpa [#allocation3], 0
    %9 = vsyncpa [#allocation6], 0
    %10 = vsyncpa [#allocation4], 0
    // Predicated region
    $region2: #{tpu_custom_call.1} parent=1 // pred_check
      _
    $region3: #{tpu_custom_call.1} parent=1 // pred_check_branch
      %12 = sbr.rel (0) target = $region5
    $region4: #{tpu_custom_call.1} parent=1 // pred_region
      %s13 = sadd.s32 0, 0
      %15 = vsyncadd [#allocation3], 0
      %s16 = smul.addr %s13, 8
      %s17 = scalar_lea.hbm %s0, %s16
      %s19 = sshll.u32 %s17, 4
      %s20 = int_to_ptr.hbm [resolvable:$true] %s19
      %s21 = sshll.u32 [#allocation2], 4
      %s22 = int_to_ptr.vmem [resolvable:$true] %s21
      %24 = dma.hbm_to_vmem [thread:$0]  %s20, 128, %s22, [#allocation3]
    $region5: #{tpu_custom_call.1} parent=1 // pred_fallthru
      _
    // Predicated region
    $region6: #{tpu_custom_call.1} parent=1 // pred_check
      _
    $region7: #{tpu_custom_call.1} parent=1 // pred_check_branch
      %26 = sbr.rel (0) target = $region9
    $region8: #{tpu_custom_call.1} parent=1 // pred_region
      %s27 = sadd.s32 0, 0
      %29 = vsyncadd [#allocation6], 0
      %s30 = smul.addr %s27, 8
      %s31 = scalar_lea.hbm %s1, %s30
      %s33 = sshll.u32 %s31, 4
      %s34 = int_to_ptr.hbm [resolvable:$true] %s33
      %s35 = sshll.u32 [#allocation5], 4
      %s36 = int_to_ptr.vmem [resolvable:$true] %s35
      %38 = dma.hbm_to_vmem [thread:$0]  %s34, 128, %s36, [#allocation6]
    $region9: #{tpu_custom_call.1} parent=1 // pred_fallthru
      _
    // Predicated region
    $region10: #{tpu_custom_call.1} parent=1 // pred_check
      _
    $region11: #{tpu_custom_call.1} parent=1 // pred_check_branch
      %40 = sbr.rel (0) target = $region13
    $region12: #{tpu_custom_call.1} parent=1 // pred_region
      %s41 = sadd.s32 0, 0
      %43 = vsyncadd [#allocation6], 0
      %s44 = smul.addr %s41, 8
      %s45 = scalar_lea.hbm %s2, %s44
      %s47 = sshll.u32 %s45, 4
      %s48 = int_to_ptr.hbm [resolvable:$true] %s47
      %s49 = sshll.u32 [#allocation7], 4
      %s50 = int_to_ptr.vmem [resolvable:$true] %s49
      %52 = dma.hbm_to_vmem [thread:$0]  %s48, 128, %s50, [#allocation6]
    $region13: #{tpu_custom_call.1} parent=1 // pred_fallthru
      _
    // Predicated region
    $region14: #{tpu_custom_call.1} parent=1 // pred_check
      _
    $region15: #{tpu_custom_call.1} parent=1 // pred_check_branch
      %54 = sbr.rel (0) target = $region17
    $region16: #{tpu_custom_call.1} parent=1 // pred_region
      %56 = dma.done [#allocation3], 128
    $region17: #{tpu_custom_call.1} parent=1 // pred_fallthru
      _
    // Predicated region
    $region18: #{tpu_custom_call.1} parent=1 // pred_check
      _
    $region19: #{tpu_custom_call.1} parent=1 // pred_check_branch
      %58 = sbr.rel (0) target = $region21
    $region20: #{tpu_custom_call.1} parent=1 // pred_region
      %60 = dma.done [#allocation6], 128
    $region21: #{tpu_custom_call.1} parent=1 // pred_fallthru
      _
    // Predicated region
    $region22: #{tpu_custom_call.1} parent=1 // pred_check
      _
    $region23: #{tpu_custom_call.1} parent=1 // pred_check_branch
      %62 = sbr.rel (0) target = $region25
    $region24: #{tpu_custom_call.1} parent=1 // pred_region
      %64 = dma.done [#allocation6], 128
    $region25: #{tpu_custom_call.1} parent=1 // pred_fallthru
      _
    %s65 = sadd.s32 0, 0
    %s66 = sadd.s32 0, 0
    %s67 = sadd.s32 0, 0
    %p68 = scmp.eq.s32.totalorder 0, 0
    // Predicated region
    $region26: #{tpu_custom_call.1} parent=1 // pred_check
      %p69 = pneg %p68
    $region27: #{tpu_custom_call.1} parent=1 // pred_check_branch
      %71 = sbr.rel (%p69) target = $region29
    $region28: #{tpu_custom_call.1} parent=1 // pred_region
      %72 = vst [vmem:[#allocation8] sm:$0xff] 0.0
    $region29: #{tpu_custom_call.1} parent=1 // pred_fallthru
      _
    %v73 = vld [vmem:[#allocation2] sm:$0xff]
    %v74 = vld [vmem:[#allocation5] sm:$0xff]
    %v75 = vmax.f32 %v74, 1e-06
    %v76 = vld [vmem:[#allocation7] sm:$0xff]
    %v77 = vlog2.pop %v75
    %v78 = vmul.f32 %v77, 0.6931472
    %v79 = vadd.f32 %v78, 0.6931472
    %v80 = vsub.f32 %v76, %v73
    %v81 = vand.u32 2147483647, %v80
    %v82 = vrcp.pop %v75
    %v83 = vmul.f32 %v75, %v82
    %v84 = vsub.f32 1.0, %v83
    %v85 = vmul.f32 %v82, %v84
    %v86 = vadd.f32 %v82, %v85
    %vm87 = vweird.f32 %v75
    %vm88 = vweird.f32 %v82
    %vm89 = vmor %vm87, %vm88
    %v90 = vsel %vm89, %v82, %v86
    %v91 = vand.u32 2147483647, %v75
    %vm92 = vcmp.eq.f32.partialorder %v91, 8.507059e+37
    %v93 = vand.u32 %v75, 2147483648
    %v94 = vor.u32 1.1754944e-38, %v93
    %v95 = vsel %vm92, %v94, %v90
    %v96 = vmul.f32 %v81, %v95
    %v97 = vadd.f32 %v79, %v96
    %v98 = vld [vmem:[#allocation8] sm:$0xff]
    %v99 = vadd.f32 %v97, 0.0
    %v100 = vadd.f32 %v98, %v99
    %101 = vst [vmem:[#allocation8] sm:$0xff] %v100
    // Predicated region
    $region30: #{tpu_custom_call.1} parent=1 // pred_check
      _
    $region31: #{tpu_custom_call.1} parent=1 // pred_check_branch
      %103 = sbr.rel (0) target = $region33
    $region32: #{tpu_custom_call.1} parent=1 // pred_region
      %105 = vsyncadd [#allocation4], 0
      %s107 = sshll.u32 [#allocation8], 4
      %s108 = int_to_ptr.vmem [resolvable:$true] %s107
      %s109 = sshll.u32 %s3, 4
      %s110 = int_to_ptr.hbm [resolvable:$true] %s109
      %112 = dma.vmem_to_hbm [thread:$0]  %s108, 128, %s110, [#allocation4]
    $region33: #{tpu_custom_call.1} parent=1 // pred_fallthru
      _
    // Predicated region
    $region34: #{tpu_custom_call.1} parent=1 // pred_check
      _
    $region35: #{tpu_custom_call.1} parent=1 // pred_check_branch
      %114 = sbr.rel (0) target = $region37
    $region36: #{tpu_custom_call.1} parent=1 // pred_region
      %116 = dma.done [#allocation4], 128
    $region37: #{tpu_custom_call.1} parent=1 // pred_fallthru
      _
    %117 = vsyncpa [#allocation3], 1
    %118 = vsyncpa [#allocation6], 1
    %119 = vsyncpa [#allocation4], 1

</llo_original>
